<compile_context>
chip_gen: v5e
topology: v5e:2x2
jax: 0.10.0
libtpu: 0.0.40
codegen_flags: <defaults>
</compile_context>

<pallas_src>
import functools

import jax
import jax.numpy as jnp
from jax import lax
from jax.experimental import pallas as pl
from jax.experimental.pallas import tpu as pltpu

# OGB-style atom feature dims (default of get_atom_feature_dims()).
DEFAULT_FEATURE_DIMS = (119, 5, 12, 12, 10, 6, 6, 2, 2)


def _round_up(x, m):
    return ((x + m - 1) // m) * m


def _node_encoder_kernel(x_ref, table_ref, o_ref, *, offsets):
    # x_ref:     int32 [T, C]
    # table_ref: f32   [V_total, E]   (concatenation of all feature tables)
    # o_ref:     f32   [T, E]
    x = x_ref[...]
    t = x.shape[0]
    v_total = table_ref.shape[0]

    vocab_iota = lax.broadcasted_iota(jnp.int32, (t, v_total), 1)
    multi_hot = jnp.zeros((t, v_total), jnp.float32)
    for c, off in enumerate(offsets):                      # static loop, C small
        idx = x[:, c:c + 1] + off                          # [T, 1]
        multi_hot = multi_hot + (vocab_iota == idx).astype(jnp.float32)

    # Single full-block, lane-aligned store.
    o_ref[...] = jnp.dot(multi_hot, table_ref[...],
                         preferred_element_type=jnp.float32)


def node_encoder(x, emb_tables, *, tile_n=1024):
    """x: int32 [N, C]; emb_tables: list of C arrays [dim_i, emb_dim] f32."""
    n, c = x.shape
    assert c == len(emb_tables)
    emb_dim = emb_tables[0].shape[1]

    dims = tuple(int(t.shape[0]) for t in emb_tables)
    offsets, acc = [], 0
    for d in dims:
        offsets.append(acc)
        acc += d
    offsets = tuple(offsets)
    big_table = jnp.concatenate(emb_tables, axis=0)        # [V_total, E]
    v_total = big_table.shape[0]

    # Tile size: multiple of 8 (f32 sublane), capped at tile_n.
    tile = min(_round_up(tile_n, 8), _round_up(n, 8))
    n_pad = _round_up(n, tile)
    if n_pad != n:
        x = jnp.pad(x, ((0, n_pad - n), (0, 0)))           # index 0 = valid row

    kernel = functools.partial(_node_encoder_kernel, offsets=offsets)

    out = pl.pallas_call(
        kernel,
        out_shape=jax.ShapeDtypeStruct((n_pad, emb_dim), jnp.float32),
        grid=(n_pad // tile,),
        in_specs=[
            pl.BlockSpec((tile, c), lambda i: (i, 0)),
            pl.BlockSpec((v_total, emb_dim), lambda i: (0, 0)),  # resident
        ],
        out_specs=pl.BlockSpec((tile, emb_dim), lambda i: (i, 0)),
        compiler_params=pltpu.CompilerParams(
            dimension_semantics=("parallel",)),
    )(x, big_table)
    return out[:n]


def _reference(x, emb_tables):
    out = 0.0
    for i, tbl in enumerate(emb_tables):
        out = out + tbl[x[:, i]]
    return out


if __name__ == "__main__":
    key = jax.random.PRNGKey(0)

    N = 50                      # deliberately not a multiple of 8 / tile
    EMB_DIM = 32
    feature_dims = DEFAULT_FEATURE_DIMS
    C = len(feature_dims)

    keys = jax.random.split(key, C + 1)

    # Per-feature embedding tables, xavier_uniform-style init.
    emb_tables = []
    for i, dim in enumerate(feature_dims):
        bound = (6.0 / (dim + EMB_DIM)) ** 0.5
        emb_tables.append(
            jax.random.uniform(keys[i], (dim, EMB_DIM), jnp.float32,
                               minval=-bound, maxval=bound))

    # Node features: column i is an index in [0, feature_dims[i]).
    cols = []
    col_keys = jax.random.split(keys[-1], C)
    for i, dim in enumerate(feature_dims):
        cols.append(jax.random.randint(col_keys[i], (N, 1), 0, dim, jnp.int32))
    x = jnp.concatenate(cols, axis=1)                      # [N, C] int32

    out = jax.block_until_ready(node_encoder(x, emb_tables))
    ref = _reference(x, emb_tables)

    assert out.shape == (N, EMB_DIM), out.shape
    assert out.dtype == jnp.float32
    assert jnp.allclose(out, ref, atol=1e-5, rtol=1e-5)

    print("KERNEL_OK")
</pallas_src>

<mosaic_0001>
module attributes {stable_mosaic.version = 11 : i64} {
  func.func @_node_encoder_kernel(%arg0: i32, %arg1: memref<56x9xi32, #tpu.memory_space<vmem>>, %arg2: memref<174x32xf32, #tpu.memory_space<vmem>>, %arg3: memref<56x32xf32, #tpu.memory_space<vmem>>) attributes {dimension_semantics = [#tpu.dimension_semantics<parallel>], iteration_bounds = array<i64: 1>, scalar_prefetch = 0 : i64, scratch_operands = 0 : i64, tpu.core_type = #tpu.core_type<tc>, window_params = [{transform_indices = @transform_0, window_bounds = array<i64: 56, 9>}, {pipeline_mode = #tpu.pipeline_mode<synchronous>, transform_indices = @transform_1, window_bounds = array<i64: 174, 32>}, {transform_indices = @transform_2, window_bounds = array<i64: 56, 32>}]} {
    %c0 = arith.constant 0 : index
    %c0_0 = arith.constant 0 : index
    %0 = vector.load %arg1[%c0, %c0_0] : memref<56x9xi32, #tpu.memory_space<vmem>>, vector<56x9xi32>
    %1 = tpu.iota {dimensions = array<i32: 1>} : vector<56x174xi32>
    %cst = arith.constant 0.000000e+00 : f32
    %2 = vector.broadcast %cst : f32 to vector<56x174xf32>
    %3 = vector.extract_strided_slice %0 {offsets = [0, 0], sizes = [56, 1], strides = [1, 1]} : vector<56x9xi32> to vector<56x1xi32>
    %c0_i32 = arith.constant 0 : i32
    %4 = vector.broadcast %c0_i32 : i32 to vector<56x1xi32>
    %5 = arith.addi %3, %4 : vector<56x1xi32>
    %6 = vector.broadcast %5 : vector<56x1xi32> to vector<56x174xi32>
    %7 = arith.cmpi eq, %1, %6 : vector<56x174xi32>
    %8 = arith.extui %7 : vector<56x174xi1> to vector<56x174xi32>
    %9 = arith.sitofp %8 : vector<56x174xi32> to vector<56x174xf32>
    %10 = arith.addf %2, %9 : vector<56x174xf32>
    %11 = vector.extract_strided_slice %0 {offsets = [0, 1], sizes = [56, 1], strides = [1, 1]} : vector<56x9xi32> to vector<56x1xi32>
    %c119_i32 = arith.constant 119 : i32
    %12 = vector.broadcast %c119_i32 : i32 to vector<56x1xi32>
    %13 = arith.addi %11, %12 : vector<56x1xi32>
    %14 = vector.broadcast %13 : vector<56x1xi32> to vector<56x174xi32>
    %15 = arith.cmpi eq, %1, %14 : vector<56x174xi32>
    %16 = arith.extui %15 : vector<56x174xi1> to vector<56x174xi32>
    %17 = arith.sitofp %16 : vector<56x174xi32> to vector<56x174xf32>
    %18 = arith.addf %10, %17 : vector<56x174xf32>
    %19 = vector.extract_strided_slice %0 {offsets = [0, 2], sizes = [56, 1], strides = [1, 1]} : vector<56x9xi32> to vector<56x1xi32>
    %c124_i32 = arith.constant 124 : i32
    %20 = vector.broadcast %c124_i32 : i32 to vector<56x1xi32>
    %21 = arith.addi %19, %20 : vector<56x1xi32>
    %22 = vector.broadcast %21 : vector<56x1xi32> to vector<56x174xi32>
    %23 = arith.cmpi eq, %1, %22 : vector<56x174xi32>
    %24 = arith.extui %23 : vector<56x174xi1> to vector<56x174xi32>
    %25 = arith.sitofp %24 : vector<56x174xi32> to vector<56x174xf32>
    %26 = arith.addf %18, %25 : vector<56x174xf32>
    %27 = vector.extract_strided_slice %0 {offsets = [0, 3], sizes = [56, 1], strides = [1, 1]} : vector<56x9xi32> to vector<56x1xi32>
    %c136_i32 = arith.constant 136 : i32
    %28 = vector.broadcast %c136_i32 : i32 to vector<56x1xi32>
    %29 = arith.addi %27, %28 : vector<56x1xi32>
    %30 = vector.broadcast %29 : vector<56x1xi32> to vector<56x174xi32>
    %31 = arith.cmpi eq, %1, %30 : vector<56x174xi32>
    %32 = arith.extui %31 : vector<56x174xi1> to vector<56x174xi32>
    %33 = arith.sitofp %32 : vector<56x174xi32> to vector<56x174xf32>
    %34 = arith.addf %26, %33 : vector<56x174xf32>
    %35 = vector.extract_strided_slice %0 {offsets = [0, 4], sizes = [56, 1], strides = [1, 1]} : vector<56x9xi32> to vector<56x1xi32>
    %c148_i32 = arith.constant 148 : i32
    %36 = vector.broadcast %c148_i32 : i32 to vector<56x1xi32>
    %37 = arith.addi %35, %36 : vector<56x1xi32>
    %38 = vector.broadcast %37 : vector<56x1xi32> to vector<56x174xi32>
    %39 = arith.cmpi eq, %1, %38 : vector<56x174xi32>
    %40 = arith.extui %39 : vector<56x174xi1> to vector<56x174xi32>
    %41 = arith.sitofp %40 : vector<56x174xi32> to vector<56x174xf32>
    %42 = arith.addf %34, %41 : vector<56x174xf32>
    %43 = vector.extract_strided_slice %0 {offsets = [0, 5], sizes = [56, 1], strides = [1, 1]} : vector<56x9xi32> to vector<56x1xi32>
    %c158_i32 = arith.constant 158 : i32
    %44 = vector.broadcast %c158_i32 : i32 to vector<56x1xi32>
    %45 = arith.addi %43, %44 : vector<56x1xi32>
    %46 = vector.broadcast %45 : vector<56x1xi32> to vector<56x174xi32>
    %47 = arith.cmpi eq, %1, %46 : vector<56x174xi32>
    %48 = arith.extui %47 : vector<56x174xi1> to vector<56x174xi32>
    %49 = arith.sitofp %48 : vector<56x174xi32> to vector<56x174xf32>
    %50 = arith.addf %42, %49 : vector<56x174xf32>
    %51 = vector.extract_strided_slice %0 {offsets = [0, 6], sizes = [56, 1], strides = [1, 1]} : vector<56x9xi32> to vector<56x1xi32>
    %c164_i32 = arith.constant 164 : i32
    %52 = vector.broadcast %c164_i32 : i32 to vector<56x1xi32>
    %53 = arith.addi %51, %52 : vector<56x1xi32>
    %54 = vector.broadcast %53 : vector<56x1xi32> to vector<56x174xi32>
    %55 = arith.cmpi eq, %1, %54 : vector<56x174xi32>
    %56 = arith.extui %55 : vector<56x174xi1> to vector<56x174xi32>
    %57 = arith.sitofp %56 : vector<56x174xi32> to vector<56x174xf32>
    %58 = arith.addf %50, %57 : vector<56x174xf32>
    %59 = vector.extract_strided_slice %0 {offsets = [0, 7], sizes = [56, 1], strides = [1, 1]} : vector<56x9xi32> to vector<56x1xi32>
    %c170_i32 = arith.constant 170 : i32
    %60 = vector.broadcast %c170_i32 : i32 to vector<56x1xi32>
    %61 = arith.addi %59, %60 : vector<56x1xi32>
    %62 = vector.broadcast %61 : vector<56x1xi32> to vector<56x174xi32>
    %63 = arith.cmpi eq, %1, %62 : vector<56x174xi32>
    %64 = arith.extui %63 : vector<56x174xi1> to vector<56x174xi32>
    %65 = arith.sitofp %64 : vector<56x174xi32> to vector<56x174xf32>
    %66 = arith.addf %58, %65 : vector<56x174xf32>
    %67 = vector.extract_strided_slice %0 {offsets = [0, 8], sizes = [56, 1], strides = [1, 1]} : vector<56x9xi32> to vector<56x1xi32>
    %c172_i32 = arith.constant 172 : i32
    %68 = vector.broadcast %c172_i32 : i32 to vector<56x1xi32>
    %69 = arith.addi %67, %68 : vector<56x1xi32>
    %70 = vector.broadcast %69 : vector<56x1xi32> to vector<56x174xi32>
    %71 = arith.cmpi eq, %1, %70 : vector<56x174xi32>
    %72 = arith.extui %71 : vector<56x174xi1> to vector<56x174xi32>
    %73 = arith.sitofp %72 : vector<56x174xi32> to vector<56x174xf32>
    %74 = arith.addf %66, %73 : vector<56x174xf32>
    %c0_1 = arith.constant 0 : index
    %c0_2 = arith.constant 0 : index
    %75 = vector.load %arg2[%c0_1, %c0_2] : memref<174x32xf32, #tpu.memory_space<vmem>>, vector<174x32xf32>
    %cst_3 = arith.constant dense<0.000000e+00> : vector<56x32xf32>
    %76 = tpu.matmul %74, %75, %cst_3 {dimension_numbers = #tpu.dot_dimension_numbers<[1], [0], [0], [1], [0, 0, 1, 1], [], []>} : vector<56x174xf32>, vector<174x32xf32>, vector<56x32xf32> -> vector<56x32xf32>
    %c0_4 = arith.constant 0 : index
    %c0_5 = arith.constant 0 : index
    %77 = vector.load %arg3[%c0_4, %c0_5] : memref<56x32xf32, #tpu.memory_space<vmem>>, vector<56x32xf32>
    tpu.vector_store %arg3[%c0_4, %c0_5], %76 {strides = array<i32>} : memref<56x32xf32, #tpu.memory_space<vmem>>, vector<56x32xf32>,
    return
  }
  func.func @transform_0(%arg0: i32) -> (i32, i32) {
    %c0_i32 = arith.constant 0 : i32
    %c0_i32_0 = arith.constant 0 : i32
    return %arg0, %c0_i32 : i32, i32
  }
  func.func @transform_1(%arg0: i32) -> (i32, i32) {
    %c0_i32 = arith.constant 0 : i32
    %c0_i32_0 = arith.constant 0 : i32
    %c0_i32_1 = arith.constant 0 : i32
    return %c0_i32, %c0_i32_0 : i32, i32
  }
  func.func @transform_2(%arg0: i32) -> (i32, i32) {
    %c0_i32 = arith.constant 0 : i32
    %c0_i32_0 = arith.constant 0 : i32
    return %arg0, %c0_i32 : i32, i32
  }
}

</mosaic_0001>

<llo_original>
// kernel: tpu_custom_call.1
$region0: #{tpu_custom_call.1}
  #allocation0 [shape = 'u32[]', space=smem, size = 0x4, offset = 0x4, fixed_abs, tag = 'smem constant byte address 0x4 - core index']
  #allocation1 [shape = 'u32[72,128]{1,0:T(1,128)}', space=vmem, size = 0x9000, scoped, tag = 'internal scratch']
  %s0 = inlined_call_operand.vmem [shape: s32[56,9], index: 0, kind: input, shape index: {}]
  %s1 = inlined_call_operand.vmem [shape: f32[174,32], index: 1, kind: input, shape index: {}]
  %s2 = inlined_call_operand.vmem [shape: f32[56,32], index: 2, kind: output, shape index: {}]
  %s3 = sld [smem:[#allocation0]]
  $region18: #{tpu_custom_call.1} parent=0
    _
  %s5 = ssub.s32 1, %s3
  %s6 = scalar_select 0, %s5, %s3
  // Predicated region
  $region2: #{tpu_custom_call.1} parent=0 // pred_check
    _
  $region3: #{tpu_custom_call.1} parent=0 // pred_check_branch
    %8 = sbr.rel (0) target = $region5
  $region4: #{tpu_custom_call.1} parent=0 // pred_region
    _
  $region5: #{tpu_custom_call.1} parent=0 // pred_fallthru
    _
  // Predicated region
  $region6: #{tpu_custom_call.1} parent=0 // pred_check
    _
  $region7: #{tpu_custom_call.1} parent=0 // pred_check_branch
    %10 = sbr.rel (0) target = $region9
  $region8: #{tpu_custom_call.1} parent=0 // pred_region
    _
  $region9: #{tpu_custom_call.1} parent=0 // pred_fallthru
    _
  %v11 = vld [vmem:[%s0] sm:$0xff]
  %v12 = vld [vmem:[%s0 + $0x8] sm:$0xff]
  %v13 = vld [vmem:[%s0 + $0x10] sm:$0xff]
  %v14 = vld [vmem:[%s0 + $0x18] sm:$0xff]
  %v15 = vld [vmem:[%s0 + $0x20] sm:$0xff]
  %v16 = vld [vmem:[%s0 + $0x28] sm:$0xff]
  %v17 = vld [vmem:[%s0 + $0x30] sm:$0xff]
  %v18 = vlaneseq
  %v19 = vand.u32 %v18, 127
  %v20 = vadd.s32 %v19, 128
  %21 = vset.pattern.permute.xlu0 0
  %22 = vperm.xlu0 %21, %v11
  %v23 = vpop.permute.xlu0 %22
  %24 = vset.pattern.permute.xlu0 0
  %25 = vperm.xlu0 %24, %v12
  %v26 = vpop.permute.xlu0 %25
  %27 = vset.pattern.permute.xlu0 0
  %28 = vperm.xlu0 %27, %v13
  %v29 = vpop.permute.xlu0 %28
  %30 = vset.pattern.permute.xlu0 0
  %31 = vperm.xlu0 %30, %v14
  %v32 = vpop.permute.xlu0 %31
  %33 = vset.pattern.permute.xlu0 0
  %34 = vperm.xlu0 %33, %v15
  %v35 = vpop.permute.xlu0 %34
  %36 = vset.pattern.permute.xlu0 0
  %37 = vperm.xlu0 %36, %v16
  %v38 = vpop.permute.xlu0 %37
  %39 = vset.pattern.permute.xlu0 0
  %40 = vperm.xlu0 %39, %v17
  %v41 = vpop.permute.xlu0 %40
  %vm42 = vcmp.eq.s32.totalorder %v19, %v23
  %vm43 = vcmp.eq.s32.totalorder %v20, %v23
  %vm44 = vcmp.eq.s32.totalorder %v19, %v26
  %vm45 = vcmp.eq.s32.totalorder %v20, %v26
  %vm46 = vcmp.eq.s32.totalorder %v19, %v29
  %vm47 = vcmp.eq.s32.totalorder %v20, %v29
  %vm48 = vcmp.eq.s32.totalorder %v19, %v32
  %vm49 = vcmp.eq.s32.totalorder %v20, %v32
  %vm50 = vcmp.eq.s32.totalorder %v19, %v35
  %vm51 = vcmp.eq.s32.totalorder %v20, %v35
  %vm52 = vcmp.eq.s32.totalorder %v19, %v38
  %vm53 = vcmp.eq.s32.totalorder %v20, %v38
  %vm54 = vcmp.eq.s32.totalorder %v19, %v41
  %vm55 = vcmp.eq.s32.totalorder %v20, %v41
  %v56 = vsel %vm42, 1, 0
  %v57 = vsel %vm43, 1, 0
  %v58 = vsel %vm44, 1, 0
  %v59 = vsel %vm45, 1, 0
  %v60 = vsel %vm46, 1, 0
  %v61 = vsel %vm47, 1, 0
  %v62 = vsel %vm48, 1, 0
  %v63 = vsel %vm49, 1, 0
  %v64 = vsel %vm50, 1, 0
  %v65 = vsel %vm51, 1, 0
  %v66 = vsel %vm52, 1, 0
  %v67 = vsel %vm53, 1, 0
  %v68 = vsel %vm54, 1, 0
  %v69 = vsel %vm55, 1, 0
  %v70 = vcvt.s32.f32 %v56
  %v71 = vcvt.s32.f32 %v57
  %v72 = vcvt.s32.f32 %v58
  %v73 = vcvt.s32.f32 %v59
  %v74 = vcvt.s32.f32 %v60
  %v75 = vcvt.s32.f32 %v61
  %v76 = vcvt.s32.f32 %v62
  %v77 = vcvt.s32.f32 %v63
  %v78 = vcvt.s32.f32 %v64
  %v79 = vcvt.s32.f32 %v65
  %v80 = vcvt.s32.f32 %v66
  %v81 = vcvt.s32.f32 %v67
  %v82 = vcvt.s32.f32 %v68
  %v83 = vcvt.s32.f32 %v69
  %v84 = vadd.f32 %v70, 0.0
  %v85 = vadd.f32 %v71, 0.0
  %v86 = vadd.f32 %v72, 0.0
  %v87 = vadd.f32 %v73, 0.0
  %v88 = vadd.f32 %v74, 0.0
  %v89 = vadd.f32 %v75, 0.0
  %v90 = vadd.f32 %v76, 0.0
  %v91 = vadd.f32 %v77, 0.0
  %v92 = vadd.f32 %v78, 0.0
  %v93 = vadd.f32 %v79, 0.0
  %v94 = vadd.f32 %v80, 0.0
  %v95 = vadd.f32 %v81, 0.0
  %v96 = vadd.f32 %v82, 0.0
  %v97 = vadd.f32 %v83, 0.0
  %v98 = vadd.s32 %v11, 119
  %v99 = vadd.s32 %v12, 119
  %v100 = vadd.s32 %v13, 119
  %v101 = vadd.s32 %v14, 119
  %v102 = vadd.s32 %v15, 119
  %v103 = vadd.s32 %v16, 119
  %v104 = vadd.s32 %v17, 119
  %105 = vset.pattern.permute.xlu0 1
  %106 = vperm.xlu0 %105, %v98
  %v107 = vpop.permute.xlu0 %106
  %108 = vset.pattern.permute.xlu0 1
  %109 = vperm.xlu0 %108, %v99
  %v110 = vpop.permute.xlu0 %109
  %111 = vset.pattern.permute.xlu0 1
  %112 = vperm.xlu0 %111, %v100
  %v113 = vpop.permute.xlu0 %112
  %114 = vset.pattern.permute.xlu0 1
  %115 = vperm.xlu0 %114, %v101
  %v116 = vpop.permute.xlu0 %115
  %117 = vset.pattern.permute.xlu0 1
  %118 = vperm.xlu0 %117, %v102
  %v119 = vpop.permute.xlu0 %118
  %120 = vset.pattern.permute.xlu0 1
  %121 = vperm.xlu0 %120, %v103
  %v122 = vpop.permute.xlu0 %121
  %123 = vset.pattern.permute.xlu0 1
  %124 = vperm.xlu0 %123, %v104
  %v125 = vpop.permute.xlu0 %124
  %vm126 = vcmp.eq.s32.totalorder %v19, %v107
  %vm127 = vcmp.eq.s32.totalorder %v20, %v107
  %vm128 = vcmp.eq.s32.totalorder %v19, %v110
  %vm129 = vcmp.eq.s32.totalorder %v20, %v110
  %vm130 = vcmp.eq.s32.totalorder %v19, %v113
  %vm131 = vcmp.eq.s32.totalorder %v20, %v113
  %vm132 = vcmp.eq.s32.totalorder %v19, %v116
  %vm133 = vcmp.eq.s32.totalorder %v20, %v116
  %vm134 = vcmp.eq.s32.totalorder %v19, %v119
  %vm135 = vcmp.eq.s32.totalorder %v20, %v119
  %vm136 = vcmp.eq.s32.totalorder %v19, %v122
  %vm137 = vcmp.eq.s32.totalorder %v20, %v122
  %vm138 = vcmp.eq.s32.totalorder %v19, %v125
  %vm139 = vcmp.eq.s32.totalorder %v20, %v125
  %v140 = vsel %vm126, 1, 0
  %v141 = vsel %vm127, 1, 0
  %v142 = vsel %vm128, 1, 0
  %v143 = vsel %vm129, 1, 0
  %v144 = vsel %vm130, 1, 0
  %v145 = vsel %vm131, 1, 0
  %v146 = vsel %vm132, 1, 0
  %v147 = vsel %vm133, 1, 0
  %v148 = vsel %vm134, 1, 0
  %v149 = vsel %vm135, 1, 0
  %v150 = vsel %vm136, 1, 0
  %v151 = vsel %vm137, 1, 0
  %v152 = vsel %vm138, 1, 0
  %v153 = vsel %vm139, 1, 0
  %v154 = vcvt.s32.f32 %v140
  %v155 = vcvt.s32.f32 %v141
  %v156 = vcvt.s32.f32 %v142
  %v157 = vcvt.s32.f32 %v143
  %v158 = vcvt.s32.f32 %v144
  %v159 = vcvt.s32.f32 %v145
  %v160 = vcvt.s32.f32 %v146
  %v161 = vcvt.s32.f32 %v147
  %v162 = vcvt.s32.f32 %v148
  %v163 = vcvt.s32.f32 %v149
  %v164 = vcvt.s32.f32 %v150
  %v165 = vcvt.s32.f32 %v151
  %v166 = vcvt.s32.f32 %v152
  %v167 = vcvt.s32.f32 %v153
  %v168 = vadd.f32 %v84, %v154
  %v169 = vadd.f32 %v85, %v155
  %v170 = vadd.f32 %v86, %v156
  %v171 = vadd.f32 %v87, %v157
  %v172 = vadd.f32 %v88, %v158
  %v173 = vadd.f32 %v89, %v159
  %v174 = vadd.f32 %v90, %v160
  %v175 = vadd.f32 %v91, %v161
  %v176 = vadd.f32 %v92, %v162
  %v177 = vadd.f32 %v93, %v163
  %v178 = vadd.f32 %v94, %v164
  %v179 = vadd.f32 %v95, %v165
  %v180 = vadd.f32 %v96, %v166
  %v181 = vadd.f32 %v97, %v167
  %v182 = vadd.s32 %v11, 124
  %v183 = vadd.s32 %v12, 124
  %v184 = vadd.s32 %v13, 124
  %v185 = vadd.s32 %v14, 124
  %v186 = vadd.s32 %v15, 124
  %v187 = vadd.s32 %v16, 124
  %v188 = vadd.s32 %v17, 124
  %189 = vset.pattern.permute.xlu0 2
  %190 = vperm.xlu0 %189, %v182
  %v191 = vpop.permute.xlu0 %190
  %192 = vset.pattern.permute.xlu0 2
  %193 = vperm.xlu0 %192, %v183
  %v194 = vpop.permute.xlu0 %193
  %195 = vset.pattern.permute.xlu0 2
  %196 = vperm.xlu0 %195, %v184
  %v197 = vpop.permute.xlu0 %196
  %198 = vset.pattern.permute.xlu0 2
  %199 = vperm.xlu0 %198, %v185
  %v200 = vpop.permute.xlu0 %199
  %201 = vset.pattern.permute.xlu0 2
  %202 = vperm.xlu0 %201, %v186
  %v203 = vpop.permute.xlu0 %202
  %204 = vset.pattern.permute.xlu0 2
  %205 = vperm.xlu0 %204, %v187
  %v206 = vpop.permute.xlu0 %205
  %207 = vset.pattern.permute.xlu0 2
  %208 = vperm.xlu0 %207, %v188
  %v209 = vpop.permute.xlu0 %208
  %vm210 = vcmp.eq.s32.totalorder %v19, %v191
  %vm211 = vcmp.eq.s32.totalorder %v20, %v191
  %vm212 = vcmp.eq.s32.totalorder %v19, %v194
  %vm213 = vcmp.eq.s32.totalorder %v20, %v194
  %vm214 = vcmp.eq.s32.totalorder %v19, %v197
  %vm215 = vcmp.eq.s32.totalorder %v20, %v197
  %vm216 = vcmp.eq.s32.totalorder %v19, %v200
  %vm217 = vcmp.eq.s32.totalorder %v20, %v200
  %vm218 = vcmp.eq.s32.totalorder %v19, %v203
  %vm219 = vcmp.eq.s32.totalorder %v20, %v203
  %vm220 = vcmp.eq.s32.totalorder %v19, %v206
  %vm221 = vcmp.eq.s32.totalorder %v20, %v206
  %vm222 = vcmp.eq.s32.totalorder %v19, %v209
  %vm223 = vcmp.eq.s32.totalorder %v20, %v209
  %v224 = vsel %vm210, 1, 0
  %v225 = vsel %vm211, 1, 0
  %v226 = vsel %vm212, 1, 0
  %v227 = vsel %vm213, 1, 0
  %v228 = vsel %vm214, 1, 0
  %v229 = vsel %vm215, 1, 0
  %v230 = vsel %vm216, 1, 0
  %v231 = vsel %vm217, 1, 0
  %v232 = vsel %vm218, 1, 0
  %v233 = vsel %vm219, 1, 0
  %v234 = vsel %vm220, 1, 0
  %v235 = vsel %vm221, 1, 0
  %v236 = vsel %vm222, 1, 0
  %v237 = vsel %vm223, 1, 0
  %v238 = vcvt.s32.f32 %v224
  %v239 = vcvt.s32.f32 %v225
  %v240 = vcvt.s32.f32 %v226
  %v241 = vcvt.s32.f32 %v227
  %v242 = vcvt.s32.f32 %v228
  %v243 = vcvt.s32.f32 %v229
  %v244 = vcvt.s32.f32 %v230
  %v245 = vcvt.s32.f32 %v231
  %v246 = vcvt.s32.f32 %v232
  %v247 = vcvt.s32.f32 %v233
  %v248 = vcvt.s32.f32 %v234
  %v249 = vcvt.s32.f32 %v235
  %v250 = vcvt.s32.f32 %v236
  %v251 = vcvt.s32.f32 %v237
  %v252 = vadd.f32 %v168, %v238
  %v253 = vadd.f32 %v169, %v239
  %v254 = vadd.f32 %v170, %v240
  %v255 = vadd.f32 %v171, %v241
  %v256 = vadd.f32 %v172, %v242
  %v257 = vadd.f32 %v173, %v243
  %v258 = vadd.f32 %v174, %v244
  %v259 = vadd.f32 %v175, %v245
  %v260 = vadd.f32 %v176, %v246
  %v261 = vadd.f32 %v177, %v247
  %v262 = vadd.f32 %v178, %v248
  %v263 = vadd.f32 %v179, %v249
  %v264 = vadd.f32 %v180, %v250
  %v265 = vadd.f32 %v181, %v251
  %v266 = vadd.s32 %v11, 136
  %v267 = vadd.s32 %v12, 136
  %v268 = vadd.s32 %v13, 136
  %v269 = vadd.s32 %v14, 136
  %v270 = vadd.s32 %v15, 136
  %v271 = vadd.s32 %v16, 136
  %v272 = vadd.s32 %v17, 136
  %273 = vset.pattern.permute.xlu0 3
  %274 = vperm.xlu0 %273, %v266
  %v275 = vpop.permute.xlu0 %274
  %276 = vset.pattern.permute.xlu0 3
  %277 = vperm.xlu0 %276, %v267
  %v278 = vpop.permute.xlu0 %277
  %279 = vset.pattern.permute.xlu0 3
  %280 = vperm.xlu0 %279, %v268
  %v281 = vpop.permute.xlu0 %280
  %282 = vset.pattern.permute.xlu0 3
  %283 = vperm.xlu0 %282, %v269
  %v284 = vpop.permute.xlu0 %283
  %285 = vset.pattern.permute.xlu0 3
  %286 = vperm.xlu0 %285, %v270
  %v287 = vpop.permute.xlu0 %286
  %288 = vset.pattern.permute.xlu0 3
  %289 = vperm.xlu0 %288, %v271
  %v290 = vpop.permute.xlu0 %289
  %291 = vset.pattern.permute.xlu0 3
  %292 = vperm.xlu0 %291, %v272
  %v293 = vpop.permute.xlu0 %292
  %vm294 = vcmp.eq.s32.totalorder %v19, %v275
  %vm295 = vcmp.eq.s32.totalorder %v20, %v275
  %vm296 = vcmp.eq.s32.totalorder %v19, %v278
  %vm297 = vcmp.eq.s32.totalorder %v20, %v278
  %vm298 = vcmp.eq.s32.totalorder %v19, %v281
  %vm299 = vcmp.eq.s32.totalorder %v20, %v281
  %vm300 = vcmp.eq.s32.totalorder %v19, %v284
  %vm301 = vcmp.eq.s32.totalorder %v20, %v284
  %vm302 = vcmp.eq.s32.totalorder %v19, %v287
  %vm303 = vcmp.eq.s32.totalorder %v20, %v287
  %vm304 = vcmp.eq.s32.totalorder %v19, %v290
  %vm305 = vcmp.eq.s32.totalorder %v20, %v290
  %vm306 = vcmp.eq.s32.totalorder %v19, %v293
  %vm307 = vcmp.eq.s32.totalorder %v20, %v293
  %v308 = vsel %vm294, 1, 0
  %v309 = vsel %vm295, 1, 0
  %v310 = vsel %vm296, 1, 0
  %v311 = vsel %vm297, 1, 0
  %v312 = vsel %vm298, 1, 0
  %v313 = vsel %vm299, 1, 0
  %v314 = vsel %vm300, 1, 0
  %v315 = vsel %vm301, 1, 0
  %v316 = vsel %vm302, 1, 0
  %v317 = vsel %vm303, 1, 0
  %v318 = vsel %vm304, 1, 0
  %v319 = vsel %vm305, 1, 0
  %v320 = vsel %vm306, 1, 0
  %v321 = vsel %vm307, 1, 0
  %v322 = vcvt.s32.f32 %v308
  %v323 = vcvt.s32.f32 %v309
  %v324 = vcvt.s32.f32 %v310
  %v325 = vcvt.s32.f32 %v311
  %v326 = vcvt.s32.f32 %v312
  %v327 = vcvt.s32.f32 %v313
  %v328 = vcvt.s32.f32 %v314
  %v329 = vcvt.s32.f32 %v315
  %v330 = vcvt.s32.f32 %v316
  %v331 = vcvt.s32.f32 %v317
  %v332 = vcvt.s32.f32 %v318
  %v333 = vcvt.s32.f32 %v319
  %v334 = vcvt.s32.f32 %v320
  %v335 = vcvt.s32.f32 %v321
  %v336 = vadd.f32 %v252, %v322
  %v337 = vadd.f32 %v253, %v323
  %v338 = vadd.f32 %v254, %v324
  %v339 = vadd.f32 %v255, %v325
  %v340 = vadd.f32 %v256, %v326
  %v341 = vadd.f32 %v257, %v327
  %v342 = vadd.f32 %v258, %v328
  %v343 = vadd.f32 %v259, %v329
  %v344 = vadd.f32 %v260, %v330
  %v345 = vadd.f32 %v261, %v331
  %v346 = vadd.f32 %v262, %v332
  %v347 = vadd.f32 %v263, %v333
  %v348 = vadd.f32 %v264, %v334
  %v349 = vadd.f32 %v265, %v335
  %v350 = vadd.s32 %v11, 148
  %v351 = vadd.s32 %v12, 148
  %v352 = vadd.s32 %v13, 148
  %v353 = vadd.s32 %v14, 148
  %v354 = vadd.s32 %v15, 148
  %v355 = vadd.s32 %v16, 148
  %v356 = vadd.s32 %v17, 148
  %357 = vset.pattern.permute.xlu0 4
  %358 = vperm.xlu0 %357, %v350
  %v359 = vpop.permute.xlu0 %358
  %360 = vset.pattern.permute.xlu0 4
  %361 = vperm.xlu0 %360, %v351
  %v362 = vpop.permute.xlu0 %361
  %363 = vset.pattern.permute.xlu0 4
  %364 = vperm.xlu0 %363, %v352
  %v365 = vpop.permute.xlu0 %364
  %366 = vset.pattern.permute.xlu0 4
  %367 = vperm.xlu0 %366, %v353
  %v368 = vpop.permute.xlu0 %367
  %369 = vset.pattern.permute.xlu0 4
  %370 = vperm.xlu0 %369, %v354
  %v371 = vpop.permute.xlu0 %370
  %372 = vset.pattern.permute.xlu0 4
  %373 = vperm.xlu0 %372, %v355
  %v374 = vpop.permute.xlu0 %373
  %375 = vset.pattern.permute.xlu0 4
  %376 = vperm.xlu0 %375, %v356
  %v377 = vpop.permute.xlu0 %376
  %vm378 = vcmp.eq.s32.totalorder %v19, %v359
  %vm379 = vcmp.eq.s32.totalorder %v20, %v359
  %vm380 = vcmp.eq.s32.totalorder %v19, %v362
  %vm381 = vcmp.eq.s32.totalorder %v20, %v362
  %vm382 = vcmp.eq.s32.totalorder %v19, %v365
  %vm383 = vcmp.eq.s32.totalorder %v20, %v365
  %vm384 = vcmp.eq.s32.totalorder %v19, %v368
  %vm385 = vcmp.eq.s32.totalorder %v20, %v368
  %vm386 = vcmp.eq.s32.totalorder %v19, %v371
  %vm387 = vcmp.eq.s32.totalorder %v20, %v371
  %vm388 = vcmp.eq.s32.totalorder %v19, %v374
  %vm389 = vcmp.eq.s32.totalorder %v20, %v374
  %vm390 = vcmp.eq.s32.totalorder %v19, %v377
  %vm391 = vcmp.eq.s32.totalorder %v20, %v377
  %v392 = vsel %vm378, 1, 0
  %v393 = vsel %vm379, 1, 0
  %v394 = vsel %vm380, 1, 0
  %v395 = vsel %vm381, 1, 0
  %v396 = vsel %vm382, 1, 0
  %v397 = vsel %vm383, 1, 0
  %v398 = vsel %vm384, 1, 0
  %v399 = vsel %vm385, 1, 0
  %v400 = vsel %vm386, 1, 0
  %v401 = vsel %vm387, 1, 0
  %v402 = vsel %vm388, 1, 0
  %v403 = vsel %vm389, 1, 0
  %v404 = vsel %vm390, 1, 0
  %v405 = vsel %vm391, 1, 0
  %v406 = vcvt.s32.f32 %v392
  %v407 = vcvt.s32.f32 %v393
  %v408 = vcvt.s32.f32 %v394
  %v409 = vcvt.s32.f32 %v395
  %v410 = vcvt.s32.f32 %v396
  %v411 = vcvt.s32.f32 %v397
  %v412 = vcvt.s32.f32 %v398
  %v413 = vcvt.s32.f32 %v399
  %v414 = vcvt.s32.f32 %v400
  %v415 = vcvt.s32.f32 %v401
  %v416 = vcvt.s32.f32 %v402
  %v417 = vcvt.s32.f32 %v403
  %v418 = vcvt.s32.f32 %v404
  %v419 = vcvt.s32.f32 %v405
  %v420 = vadd.f32 %v336, %v406
  %v421 = vadd.f32 %v337, %v407
  %v422 = vadd.f32 %v338, %v408
  %v423 = vadd.f32 %v339, %v409
  %v424 = vadd.f32 %v340, %v410
  %v425 = vadd.f32 %v341, %v411
  %v426 = vadd.f32 %v342, %v412
  %v427 = vadd.f32 %v343, %v413
  %v428 = vadd.f32 %v344, %v414
  %v429 = vadd.f32 %v345, %v415
  %v430 = vadd.f32 %v346, %v416
  %v431 = vadd.f32 %v347, %v417
  %v432 = vadd.f32 %v348, %v418
  %v433 = vadd.f32 %v349, %v419
  %v434 = vadd.s32 %v11, 158
  %v435 = vadd.s32 %v12, 158
  %v436 = vadd.s32 %v13, 158
  %v437 = vadd.s32 %v14, 158
  %v438 = vadd.s32 %v15, 158
  %v439 = vadd.s32 %v16, 158
  %v440 = vadd.s32 %v17, 158
  %441 = vset.pattern.permute.xlu0 5
  %442 = vperm.xlu0 %441, %v434
  %v443 = vpop.permute.xlu0 %442
  %444 = vset.pattern.permute.xlu0 5
  %445 = vperm.xlu0 %444, %v435
  %v446 = vpop.permute.xlu0 %445
  %447 = vset.pattern.permute.xlu0 5
  %448 = vperm.xlu0 %447, %v436
  %v449 = vpop.permute.xlu0 %448
  %450 = vset.pattern.permute.xlu0 5
  %451 = vperm.xlu0 %450, %v437
  %v452 = vpop.permute.xlu0 %451
  %453 = vset.pattern.permute.xlu0 5
  %454 = vperm.xlu0 %453, %v438
  %v455 = vpop.permute.xlu0 %454
  %456 = vset.pattern.permute.xlu0 5
  %457 = vperm.xlu0 %456, %v439
  %v458 = vpop.permute.xlu0 %457
  %459 = vset.pattern.permute.xlu0 5
  %460 = vperm.xlu0 %459, %v440
  %v461 = vpop.permute.xlu0 %460
  %vm462 = vcmp.eq.s32.totalorder %v19, %v443
  %vm463 = vcmp.eq.s32.totalorder %v20, %v443
  %vm464 = vcmp.eq.s32.totalorder %v19, %v446
  %vm465 = vcmp.eq.s32.totalorder %v20, %v446
  %vm466 = vcmp.eq.s32.totalorder %v19, %v449
  %vm467 = vcmp.eq.s32.totalorder %v20, %v449
  %vm468 = vcmp.eq.s32.totalorder %v19, %v452
  %vm469 = vcmp.eq.s32.totalorder %v20, %v452
  %vm470 = vcmp.eq.s32.totalorder %v19, %v455
  %vm471 = vcmp.eq.s32.totalorder %v20, %v455
  %vm472 = vcmp.eq.s32.totalorder %v19, %v458
  %vm473 = vcmp.eq.s32.totalorder %v20, %v458
  %vm474 = vcmp.eq.s32.totalorder %v19, %v461
  %vm475 = vcmp.eq.s32.totalorder %v20, %v461
  %v476 = vsel %vm462, 1, 0
  %v477 = vsel %vm463, 1, 0
  %v478 = vsel %vm464, 1, 0
  %v479 = vsel %vm465, 1, 0
  %v480 = vsel %vm466, 1, 0
  %v481 = vsel %vm467, 1, 0
  %v482 = vsel %vm468, 1, 0
  %v483 = vsel %vm469, 1, 0
  %v484 = vsel %vm470, 1, 0
  %v485 = vsel %vm471, 1, 0
  %v486 = vsel %vm472, 1, 0
  %v487 = vsel %vm473, 1, 0
  %v488 = vsel %vm474, 1, 0
  %v489 = vsel %vm475, 1, 0
  %v490 = vcvt.s32.f32 %v476
  %v491 = vcvt.s32.f32 %v477
  %v492 = vcvt.s32.f32 %v478
  %v493 = vcvt.s32.f32 %v479
  %v494 = vcvt.s32.f32 %v480
  %v495 = vcvt.s32.f32 %v481
  %v496 = vcvt.s32.f32 %v482
  %v497 = vcvt.s32.f32 %v483
  %v498 = vcvt.s32.f32 %v484
  %v499 = vcvt.s32.f32 %v485
  %v500 = vcvt.s32.f32 %v486
  %v501 = vcvt.s32.f32 %v487
  %v502 = vcvt.s32.f32 %v488
  %v503 = vcvt.s32.f32 %v489
  %v504 = vadd.f32 %v420, %v490
  %v505 = vadd.f32 %v421, %v491
  %v506 = vadd.f32 %v422, %v492
  %v507 = vadd.f32 %v423, %v493
  %v508 = vadd.f32 %v424, %v494
  %v509 = vadd.f32 %v425, %v495
  %v510 = vadd.f32 %v426, %v496
  %v511 = vadd.f32 %v427, %v497
  %v512 = vadd.f32 %v428, %v498
  %v513 = vadd.f32 %v429, %v499
  %v514 = vadd.f32 %v430, %v500
  %v515 = vadd.f32 %v431, %v501
  %v516 = vadd.f32 %v432, %v502
  %v517 = vadd.f32 %v433, %v503
  %v518 = vadd.s32 %v11, 164
  %v519 = vadd.s32 %v12, 164
  %v520 = vadd.s32 %v13, 164
  %v521 = vadd.s32 %v14, 164
  %v522 = vadd.s32 %v15, 164
  %v523 = vadd.s32 %v16, 164
  %v524 = vadd.s32 %v17, 164
  %525 = vset.pattern.permute.xlu0 6
  %526 = vperm.xlu0 %525, %v518
  %v527 = vpop.permute.xlu0 %526
  %528 = vset.pattern.permute.xlu0 6
  %529 = vperm.xlu0 %528, %v519
  %v530 = vpop.permute.xlu0 %529
  %531 = vset.pattern.permute.xlu0 6
  %532 = vperm.xlu0 %531, %v520
  %v533 = vpop.permute.xlu0 %532
  %534 = vset.pattern.permute.xlu0 6
  %535 = vperm.xlu0 %534, %v521
  %v536 = vpop.permute.xlu0 %535
  %537 = vset.pattern.permute.xlu0 6
  %538 = vperm.xlu0 %537, %v522
  %v539 = vpop.permute.xlu0 %538
  %540 = vset.pattern.permute.xlu0 6
  %541 = vperm.xlu0 %540, %v523
  %v542 = vpop.permute.xlu0 %541
  %543 = vset.pattern.permute.xlu0 6
  %544 = vperm.xlu0 %543, %v524
  %v545 = vpop.permute.xlu0 %544
  %vm546 = vcmp.eq.s32.totalorder %v19, %v527
  %vm547 = vcmp.eq.s32.totalorder %v20, %v527
  %vm548 = vcmp.eq.s32.totalorder %v19, %v530
  %vm549 = vcmp.eq.s32.totalorder %v20, %v530
  %vm550 = vcmp.eq.s32.totalorder %v19, %v533
  %vm551 = vcmp.eq.s32.totalorder %v20, %v533
  %vm552 = vcmp.eq.s32.totalorder %v19, %v536
  %vm553 = vcmp.eq.s32.totalorder %v20, %v536
  %vm554 = vcmp.eq.s32.totalorder %v19, %v539
  %vm555 = vcmp.eq.s32.totalorder %v20, %v539
  %vm556 = vcmp.eq.s32.totalorder %v19, %v542
  %vm557 = vcmp.eq.s32.totalorder %v20, %v542
  %vm558 = vcmp.eq.s32.totalorder %v19, %v545
  %vm559 = vcmp.eq.s32.totalorder %v20, %v545
  %v560 = vsel %vm546, 1, 0
  %v561 = vsel %vm547, 1, 0
  %v562 = vsel %vm548, 1, 0
  %v563 = vsel %vm549, 1, 0
  %v564 = vsel %vm550, 1, 0
  %v565 = vsel %vm551, 1, 0
  %v566 = vsel %vm552, 1, 0
  %v567 = vsel %vm553, 1, 0
  %v568 = vsel %vm554, 1, 0
  %v569 = vsel %vm555, 1, 0
  %v570 = vsel %vm556, 1, 0
  %v571 = vsel %vm557, 1, 0
  %v572 = vsel %vm558, 1, 0
  %v573 = vsel %vm559, 1, 0
  %v574 = vcvt.s32.f32 %v560
  %v575 = vcvt.s32.f32 %v561
  %v576 = vcvt.s32.f32 %v562
  %v577 = vcvt.s32.f32 %v563
  %v578 = vcvt.s32.f32 %v564
  %v579 = vcvt.s32.f32 %v565
  %v580 = vcvt.s32.f32 %v566
  %v581 = vcvt.s32.f32 %v567
  %v582 = vcvt.s32.f32 %v568
  %v583 = vcvt.s32.f32 %v569
  %v584 = vcvt.s32.f32 %v570
  %v585 = vcvt.s32.f32 %v571
  %v586 = vcvt.s32.f32 %v572
  %v587 = vcvt.s32.f32 %v573
  %v588 = vadd.f32 %v504, %v574
  %v589 = vadd.f32 %v505, %v575
  %v590 = vadd.f32 %v506, %v576
  %v591 = vadd.f32 %v507, %v577
  %v592 = vadd.f32 %v508, %v578
  %v593 = vadd.f32 %v509, %v579
  %v594 = vadd.f32 %v510, %v580
  %v595 = vadd.f32 %v511, %v581
  %v596 = vadd.f32 %v512, %v582
  %v597 = vadd.f32 %v513, %v583
  %v598 = vadd.f32 %v514, %v584
  %v599 = vadd.f32 %v515, %v585
  %v600 = vadd.f32 %v516, %v586
  %v601 = vadd.f32 %v517, %v587
  %v602 = vadd.s32 %v11, 170
  %v603 = vadd.s32 %v12, 170
  %v604 = vadd.s32 %v13, 170
  %v605 = vadd.s32 %v14, 170
  %v606 = vadd.s32 %v15, 170
  %v607 = vadd.s32 %v16, 170
  %v608 = vadd.s32 %v17, 170
  %609 = vset.pattern.permute.xlu0 7
  %610 = vperm.xlu0 %609, %v602
  %v611 = vpop.permute.xlu0 %610
  %612 = vset.pattern.permute.xlu0 7
  %613 = vperm.xlu0 %612, %v603
  %v614 = vpop.permute.xlu0 %613
  %615 = vset.pattern.permute.xlu0 7
  %616 = vperm.xlu0 %615, %v604
  %v617 = vpop.permute.xlu0 %616
  %618 = vset.pattern.permute.xlu0 7
  %619 = vperm.xlu0 %618, %v605
  %v620 = vpop.permute.xlu0 %619
  %621 = vset.pattern.permute.xlu0 7
  %622 = vperm.xlu0 %621, %v606
  %v623 = vpop.permute.xlu0 %622
  %624 = vset.pattern.permute.xlu0 7
  %625 = vperm.xlu0 %624, %v607
  %v626 = vpop.permute.xlu0 %625
  %627 = vset.pattern.permute.xlu0 7
  %628 = vperm.xlu0 %627, %v608
  %v629 = vpop.permute.xlu0 %628
  %vm630 = vcmp.eq.s32.totalorder %v19, %v611
  %vm631 = vcmp.eq.s32.totalorder %v20, %v611
  %vm632 = vcmp.eq.s32.totalorder %v19, %v614
  %vm633 = vcmp.eq.s32.totalorder %v20, %v614
  %vm634 = vcmp.eq.s32.totalorder %v19, %v617
  %vm635 = vcmp.eq.s32.totalorder %v20, %v617
  %vm636 = vcmp.eq.s32.totalorder %v19, %v620
  %vm637 = vcmp.eq.s32.totalorder %v20, %v620
  %vm638 = vcmp.eq.s32.totalorder %v19, %v623
  %vm639 = vcmp.eq.s32.totalorder %v20, %v623
  %vm640 = vcmp.eq.s32.totalorder %v19, %v626
  %vm641 = vcmp.eq.s32.totalorder %v20, %v626
  %vm642 = vcmp.eq.s32.totalorder %v19, %v629
  %vm643 = vcmp.eq.s32.totalorder %v20, %v629
  %v644 = vsel %vm630, 1, 0
  %v645 = vsel %vm631, 1, 0
  %v646 = vsel %vm632, 1, 0
  %v647 = vsel %vm633, 1, 0
  %v648 = vsel %vm634, 1, 0
  %v649 = vsel %vm635, 1, 0
  %v650 = vsel %vm636, 1, 0
  %v651 = vsel %vm637, 1, 0
  %v652 = vsel %vm638, 1, 0
  %v653 = vsel %vm639, 1, 0
  %v654 = vsel %vm640, 1, 0
  %v655 = vsel %vm641, 1, 0
  %v656 = vsel %vm642, 1, 0
  %v657 = vsel %vm643, 1, 0
  %v658 = vcvt.s32.f32 %v644
  %v659 = vcvt.s32.f32 %v645
  %v660 = vcvt.s32.f32 %v646
  %v661 = vcvt.s32.f32 %v647
  %v662 = vcvt.s32.f32 %v648
  %v663 = vcvt.s32.f32 %v649
  %v664 = vcvt.s32.f32 %v650
  %v665 = vcvt.s32.f32 %v651
  %v666 = vcvt.s32.f32 %v652
  %v667 = vcvt.s32.f32 %v653
  %v668 = vcvt.s32.f32 %v654
  %v669 = vcvt.s32.f32 %v655
  %v670 = vcvt.s32.f32 %v656
  %v671 = vcvt.s32.f32 %v657
  %v672 = vadd.f32 %v588, %v658
  %v673 = vadd.f32 %v589, %v659
  %v674 = vadd.f32 %v590, %v660
  %v675 = vadd.f32 %v591, %v661
  %v676 = vadd.f32 %v592, %v662
  %v677 = vadd.f32 %v593, %v663
  %v678 = vadd.f32 %v594, %v664
  %v679 = vadd.f32 %v595, %v665
  %v680 = vadd.f32 %v596, %v666
  %v681 = vadd.f32 %v597, %v667
  %v682 = vadd.f32 %v598, %v668
  %v683 = vadd.f32 %v599, %v669
  %v684 = vadd.f32 %v600, %v670
  %v685 = vadd.f32 %v601, %v671
  %v686 = vadd.s32 %v11, 172
  %v687 = vadd.s32 %v12, 172
  %v688 = vadd.s32 %v13, 172
  %v689 = vadd.s32 %v14, 172
  %v690 = vadd.s32 %v15, 172
  %v691 = vadd.s32 %v16, 172
  %v692 = vadd.s32 %v17, 172
  %693 = vset.pattern.permute.xlu0 8
  %694 = vperm.xlu0 %693, %v686
  %v695 = vpop.permute.xlu0 %694
  %696 = vset.pattern.permute.xlu0 8
  %697 = vperm.xlu0 %696, %v687
  %v698 = vpop.permute.xlu0 %697
  %699 = vset.pattern.permute.xlu0 8
  %700 = vperm.xlu0 %699, %v688
  %v701 = vpop.permute.xlu0 %700
  %702 = vset.pattern.permute.xlu0 8
  %703 = vperm.xlu0 %702, %v689
  %v704 = vpop.permute.xlu0 %703
  %705 = vset.pattern.permute.xlu0 8
  %706 = vperm.xlu0 %705, %v690
  %v707 = vpop.permute.xlu0 %706
  %708 = vset.pattern.permute.xlu0 8
  %709 = vperm.xlu0 %708, %v691
  %v710 = vpop.permute.xlu0 %709
  %711 = vset.pattern.permute.xlu0 8
  %712 = vperm.xlu0 %711, %v692
  %v713 = vpop.permute.xlu0 %712
  %vm714 = vcmp.eq.s32.totalorder %v19, %v695
  %vm715 = vcmp.eq.s32.totalorder %v20, %v695
  %vm716 = vcmp.eq.s32.totalorder %v19, %v698
  %vm717 = vcmp.eq.s32.totalorder %v20, %v698
  %vm718 = vcmp.eq.s32.totalorder %v19, %v701
  %vm719 = vcmp.eq.s32.totalorder %v20, %v701
  %vm720 = vcmp.eq.s32.totalorder %v19, %v704
  %vm721 = vcmp.eq.s32.totalorder %v20, %v704
  %vm722 = vcmp.eq.s32.totalorder %v19, %v707
  %vm723 = vcmp.eq.s32.totalorder %v20, %v707
  %vm724 = vcmp.eq.s32.totalorder %v19, %v710
  %vm725 = vcmp.eq.s32.totalorder %v20, %v710
  %vm726 = vcmp.eq.s32.totalorder %v19, %v713
  %vm727 = vcmp.eq.s32.totalorder %v20, %v713
  %v728 = vsel %vm714, 1, 0
  %v729 = vsel %vm715, 1, 0
  %v730 = vsel %vm716, 1, 0
  %v731 = vsel %vm717, 1, 0
  %v732 = vsel %vm718, 1, 0
  %v733 = vsel %vm719, 1, 0
  %v734 = vsel %vm720, 1, 0
  %v735 = vsel %vm721, 1, 0
  %v736 = vsel %vm722, 1, 0
  %v737 = vsel %vm723, 1, 0
  %v738 = vsel %vm724, 1, 0
  %v739 = vsel %vm725, 1, 0
  %v740 = vsel %vm726, 1, 0
  %v741 = vsel %vm727, 1, 0
  %v742 = vcvt.s32.f32 %v728
  %v743 = vcvt.s32.f32 %v729
  %v744 = vcvt.s32.f32 %v730
  %v745 = vcvt.s32.f32 %v731
  %v746 = vcvt.s32.f32 %v732
  %v747 = vcvt.s32.f32 %v733
  %v748 = vcvt.s32.f32 %v734
  %v749 = vcvt.s32.f32 %v735
  %v750 = vcvt.s32.f32 %v736
  %v751 = vcvt.s32.f32 %v737
  %v752 = vcvt.s32.f32 %v738
  %v753 = vcvt.s32.f32 %v739
  %v754 = vcvt.s32.f32 %v740
  %v755 = vcvt.s32.f32 %v741
  %v756 = vadd.f32 %v672, %v742
  %v757 = vadd.f32 %v673, %v743
  %v758 = vadd.f32 %v674, %v744
  %v759 = vadd.f32 %v675, %v745
  %v760 = vadd.f32 %v676, %v746
  %v761 = vadd.f32 %v677, %v747
  %v762 = vadd.f32 %v678, %v748
  %v763 = vadd.f32 %v679, %v749
  %v764 = vadd.f32 %v680, %v750
  %v765 = vadd.f32 %v681, %v751
  %v766 = vadd.f32 %v682, %v752
  %v767 = vadd.f32 %v683, %v753
  %v768 = vadd.f32 %v684, %v754
  %v769 = vadd.f32 %v685, %v755
  %v770 = vld [vmem:[%s1] sm:$0xff]
  %v771 = vld [vmem:[%s1 + $0x8] sm:$0xff]
  %v772 = vld [vmem:[%s1 + $0x10] sm:$0xff]
  %v773 = vld [vmem:[%s1 + $0x18] sm:$0xff]
  %v774 = vld [vmem:[%s1 + $0x20] sm:$0xff]
  %v775 = vld [vmem:[%s1 + $0x28] sm:$0xff]
  %v776 = vld [vmem:[%s1 + $0x30] sm:$0xff]
  %v777 = vld [vmem:[%s1 + $0x38] sm:$0xff]
  %v778 = vld [vmem:[%s1 + $0x40] sm:$0xff]
  %v779 = vld [vmem:[%s1 + $0x48] sm:$0xff]
  %v780 = vld [vmem:[%s1 + $0x50] sm:$0xff]
  %v781 = vld [vmem:[%s1 + $0x58] sm:$0xff]
  %v782 = vld [vmem:[%s1 + $0x60] sm:$0xff]
  %v783 = vld [vmem:[%s1 + $0x68] sm:$0xff]
  %v784 = vld [vmem:[%s1 + $0x70] sm:$0xff]
  %v785 = vld [vmem:[%s1 + $0x78] sm:$0xff]
  %v786 = vld [vmem:[%s1 + $0x80] sm:$0xff]
  %v787 = vld [vmem:[%s1 + $0x88] sm:$0xff]
  %v788 = vld [vmem:[%s1 + $0x90] sm:$0xff]
  %v789 = vld [vmem:[%s1 + $0x98] sm:$0xff]
  %v790 = vld [vmem:[%s1 + $0xa0] sm:$0xff]
  %v791 = vld [vmem:[%s1 + $0xa8] sm:$0x3f]
  %vm792 = vcmask 375808
  %v794 = vsel %vm792, %v757, 0
  %v797 = vsel %vm792, %v759, 0
  %v800 = vsel %vm792, %v761, 0
  %v803 = vsel %vm792, %v763, 0
  %v806 = vsel %vm792, %v765, 0
  %v809 = vsel %vm792, %v767, 0
  %v812 = vsel %vm792, %v769, 0
  %vm814 = vcmask 1045504
  %v816 = vsel %vm814, %v791, 0
  %818 = vmatpush.msra.mxu0 %v785
  %819 = vmatpush.msra.mxu0 %v784
  %820 = vmatpush.msra.mxu0 %v783
  %821 = vmatpush.msra.mxu0 %v782
  %822 = vmatpush.msra.mxu0 %v781
  %823 = vmatpush.msra.mxu0 %v780
  %824 = vmatpush.msra.mxu0 %v779
  %825 = vmatpush.msra.mxu0 %v778
  %826 = vmatpush.msra.mxu0 %v777
  %827 = vmatpush.msra.mxu0 %v776
  %828 = vmatpush.msra.mxu0 %v775
  %829 = vmatpush.msra.mxu0 %v774
  %830 = vmatpush.msra.mxu0 %v773
  %831 = vmatpush.msra.mxu0 %v772
  %832 = vmatpush.msra.mxu0 %v771
  %833 = vmatpush.msra.mxu0 %v770
  %834 = vmatmul.f32.gmra.mxu0 %v756
  %v835 = vpop.f32.mrf.mxu0
  %v836 = vadd.f32 0.0, %v835
  %837 = vmatmul.f32.gmra.mxu0 %v758
  %v838 = vpop.f32.mrf.mxu0
  %v839 = vadd.f32 0.0, %v838
  %840 = vmatmul.f32.gmra.mxu0 %v760
  %v841 = vpop.f32.mrf.mxu0
  %v842 = vadd.f32 0.0, %v841
  %843 = vmatmul.f32.gmra.mxu0 %v762
  %v844 = vpop.f32.mrf.mxu0
  %v845 = vadd.f32 0.0, %v844
  %846 = vmatmul.f32.gmra.mxu0 %v764
  %v847 = vpop.f32.mrf.mxu0
  %v848 = vadd.f32 0.0, %v847
  %849 = vmatmul.f32.gmra.mxu0 %v766
  %v850 = vpop.f32.mrf.mxu0
  %v851 = vadd.f32 0.0, %v850
  %852 = vmatmul.f32.gmra.mxu0 %v768
  %v853 = vpop.f32.mrf.mxu0
  %v854 = vadd.f32 0.0, %v853
  %855 = vdwg.mxu0
  %856 = vmatpush.msra.mxu0 0.0
  %857 = vmatpush.msra.mxu0 0.0
  %858 = vmatpush.msra.mxu0 0.0
  %859 = vmatpush.msra.mxu0 0.0
  %860 = vmatpush.msra.mxu0 0.0
  %861 = vmatpush.msra.mxu0 0.0
  %862 = vmatpush.msra.mxu0 0.0
  %863 = vmatpush.msra.mxu0 0.0
  %864 = vmatpush.msra.mxu0 0.0
  %865 = vmatpush.msra.mxu0 0.0
  %866 = vmatpush.msra.mxu0 %v816
  %867 = vmatpush.msra.mxu0 %v790
  %868 = vmatpush.msra.mxu0 %v789
  %869 = vmatpush.msra.mxu0 %v788
  %870 = vmatpush.msra.mxu0 %v787
  %871 = vmatpush.msra.mxu0 %v786
  %872 = vmatmul.f32.gmra.mxu0 %v794
  %v873 = vpop.f32.mrf.mxu0
  %v874 = vadd.f32 %v836, %v873
  %875 = vmatmul.f32.gmra.mxu0 %v797
  %v876 = vpop.f32.mrf.mxu0
  %v877 = vadd.f32 %v839, %v876
  %878 = vmatmul.f32.gmra.mxu0 %v800
  %v879 = vpop.f32.mrf.mxu0
  %v880 = vadd.f32 %v842, %v879
  %881 = vmatmul.f32.gmra.mxu0 %v803
  %v882 = vpop.f32.mrf.mxu0
  %v883 = vadd.f32 %v845, %v882
  %884 = vmatmul.f32.gmra.mxu0 %v806
  %v885 = vpop.f32.mrf.mxu0
  %v886 = vadd.f32 %v848, %v885
  %887 = vmatmul.f32.gmra.mxu0 %v809
  %v888 = vpop.f32.mrf.mxu0
  %v889 = vadd.f32 %v851, %v888
  %890 = vmatmul.f32.gmra.mxu0 %v812
  %v891 = vpop.f32.mrf.mxu0
  %v892 = vadd.f32 %v854, %v891
  %893 = vdwg.mxu0
  %vm894 = vcmask 261120
  %895 = vst.msk [vmem:[%s2] sm:$0xff] %vm894, %v874
  %896 = vst.msk [vmem:[%s2 + $0x8] sm:$0xff] %vm894, %v877
  %897 = vst.msk [vmem:[%s2 + $0x10] sm:$0xff] %vm894, %v880
  %898 = vst.msk [vmem:[%s2 + $0x18] sm:$0xff] %vm894, %v883
  %899 = vst.msk [vmem:[%s2 + $0x20] sm:$0xff] %vm894, %v886
  %900 = vst.msk [vmem:[%s2 + $0x28] sm:$0xff] %vm894, %v889
  %901 = vst.msk [vmem:[%s2 + $0x30] sm:$0xff] %vm894, %v892
  // Predicated region
  $region10: #{tpu_custom_call.1} parent=0 // pred_check
    _
  $region11: #{tpu_custom_call.1} parent=0 // pred_check_branch
    %903 = sbr.rel (0) target = $region13
  $region12: #{tpu_custom_call.1} parent=0 // pred_region
    _
  $region13: #{tpu_custom_call.1} parent=0 // pred_fallthru
    _
  // Predicated region
  $region14: #{tpu_custom_call.1} parent=0 // pred_check
    _
  $region15: #{tpu_custom_call.1} parent=0 // pred_check_branch
    %905 = sbr.rel (0) target = $region17
  $region16: #{tpu_custom_call.1} parent=0 // pred_region
    _
  $region17: #{tpu_custom_call.1} parent=0 // pred_fallthru
    _

</llo_original>
